<compile_context>
chip_gen: v5e
topology: v5e:2x2
jax: 0.10.0
libtpu: 0.0.40
codegen_flags: <defaults>
</compile_context>

<pallas_src>
import jax
import jax.numpy as jnp
from jax.experimental import pallas as pl
from jax.experimental.pallas import tpu as pltpu

# ------------------------- problem sizes (small) ---------------------------
BATCH = 2
SEQ = 16
HIDDEN = 128
N_HEADS = 4
FFN = 256
VOCAB = 50
NUM_LABELS = 8
LANE = 128  # lane-dense padding for the output / fused weights


# =========================== Pallas head kernel ============================
def _single_model_head_kernel(
    span_ref,  # VMEM (B, 2) int32, 1-indexed [start, end) span per batch row
    enc_ref,   # VMEM (B, S, H) f32
    cls_ref,   # VMEM (B, H)    f32
    w_ref,     # VMEM (2H, Lp)  f32  fused vstack(Wc@Wo_top, Wh@Wo_bot), lane-padded
    c_ref,     # VMEM (1, Lp)   f32  fused bias, lane-padded
    out_ref,   # VMEM (B, Lp)   f32  lane-dense; first L lanes are the logits
):
    B, S, H = enc_ref.shape

    # --- head_mean[i] = mean(encoded[i][start_i-1 : end_i-1], axis=0) -------
    # Vectorized over batch: 0/1 mask over the sequence axis, masked sum, then
    # ONE exact divide of the (B, H) sum by the (clamped) row count.
    tok = jax.lax.broadcasted_iota(jnp.int32, (B, S), 1)
    s = span_ref[:, 0:1] - 1                   # (B, 1)  1-indexed -> 0-indexed
    e = span_ref[:, 1:2] - 1                   # (B, 1)
    mask = (tok >= s) & (tok < e)              # (B, S)
    w01 = jnp.where(mask, 1.0, 0.0)            # (B, S)
    head_sum = jnp.sum(enc_ref[...] * w01[:, :, None], axis=1)        # (B, H)
    # Denominator uses the CLAMPED span so it equals the number of rows the
    # reference's Python slice actually averages; cnt == 0 (empty or reversed
    # span) yields 0/0 = NaN, identical to mean of an empty slice.
    cnt = jnp.maximum(
        jnp.clip(e, 0, S) - jnp.clip(s, 0, S), 0
    ).astype(jnp.float32)                      # (B, 1)
    head_mean = head_sum / cnt                 # (B, H) exact divide

    # --- fused affine head: out = cat(cls, head_mean) @ W + c ---------------
    # Single K=2H MXU contraction; lane-dense unmasked (B, Lp) store.
    x = jnp.concatenate([cls_ref[...], head_mean], axis=-1)           # (B, 2H)
    out_ref[...] = (
        jnp.dot(x, w_ref[...], preferred_element_type=jnp.float32) + c_ref[...]
    )


def fuse_head_params(params, lane_pad=LANE):
    """Collapse cls_extractor / head_extractor / out into one (2H, Lp) mat + bias.

        out = cat(cls@Wc+bc, hm@Wh+bh) @ Wo + bo
            = cat(cls, hm) @ vstack(Wc @ Wo[:H], Wh @ Wo[H:])
              + (bc @ Wo[:H] + bh @ Wo[H:] + bo)

    The label dim L is zero-padded to Lp (multiple of 128) so the kernel's
    output store is lane-dense; padded lanes are exactly zero.
    Done once on host (f32 reassociation ~1e-6 rel error, well inside tol).
    """
    H = params["w_cls"].shape[0]
    L = params["w_out"].shape[1]
    Lp = max(((L + lane_pad - 1) // lane_pad) * lane_pad, lane_pad)
    wo_top = params["w_out"][:H]   # (H, L)
    wo_bot = params["w_out"][H:]   # (H, L)
    A = params["w_cls"] @ wo_top   # (H, L)
    Bm = params["w_head"] @ wo_bot  # (H, L)
    W = jnp.concatenate([A, Bm], axis=0)                      # (2H, L)
    c = params["b_cls"] @ wo_top + params["b_head"] @ wo_bot + params["b_out"]
    pad2 = [(0, 0), (0, Lp - L)]
    return {
        "W": jnp.pad(W, pad2).astype(jnp.float32),            # (2H, Lp)
        "c": jnp.pad(c.reshape(1, -1), pad2).astype(jnp.float32),  # (1, Lp)
        "num_labels": L,
    }


def single_model_head(encoded, cls, head_start, head_end, fused):
    """Pallas wrapper for the SingleModel head (everything after BERT)."""
    B, S, H = encoded.shape
    Lp = fused["W"].shape[1]
    L = fused["num_labels"]

    span = jnp.stack(
        [head_start.astype(jnp.int32), head_end.astype(jnp.int32)], axis=1
    )  # (B, 2)

    vmem = pl.BlockSpec(memory_space=pltpu.MemorySpace.VMEM)

    cost = pl.CostEstimate(
        flops=2 * B * S * H            # masked multiply + sequence reduce
        + B * H                        # divide
        + 2 * B * (2 * H) * Lp         # fused matmul
        + B * Lp,                      # bias add
        transcendentals=0,
        bytes_accessed=4 * (B * S * H + B * H + 2 * H * Lp + Lp + B * Lp)
        + 4 * B * 2,
    )

    out_pad = pl.pallas_call(
        _single_model_head_kernel,
        out_shape=jax.ShapeDtypeStruct((B, Lp), jnp.float32),
        in_specs=[vmem] * 5,
        out_specs=vmem,
        cost_estimate=cost,
    )(
        span,
        encoded.astype(jnp.float32),
        cls.astype(jnp.float32),
        fused["W"],
        fused["c"],
    )
    return out_pad[:, :L]


# ======================= plain-JAX reference (check) =======================
def single_model_head_reference(encoded, cls, head_start, head_end, params):
    B, S, H = encoded.shape
    hm = []
    for i in range(B):
        s = int(head_start[i]) - 1
        e = int(head_end[i]) - 1
        hm.append(jnp.mean(encoded[i, s:e], axis=0))
    head_mean = jnp.stack(hm)
    cls_out = cls @ params["w_cls"] + params["b_cls"]
    head_out = head_mean @ params["w_head"] + params["b_head"]
    cat = jnp.concatenate([cls_out, head_out], axis=1)
    return cat @ params["w_out"] + params["b_out"]


# =============== tiny deterministic 1-layer "BERT" encoder =================
def _dense_init(key, fan_in, fan_out):
    return jax.random.normal(key, (fan_in, fan_out), jnp.float32) * 0.02


def init_bert_params(key):
    ks = jax.random.split(key, 16)
    H, F = HIDDEN, FFN
    return {
        "word_emb": jax.random.normal(ks[0], (VOCAB, H), jnp.float32) * 0.02,
        "pos_emb": jax.random.normal(ks[1], (SEQ, H), jnp.float32) * 0.02,
        "type_emb": jax.random.normal(ks[2], (2, H), jnp.float32) * 0.02,
        "emb_ln_g": jnp.ones((H,), jnp.float32),
        "emb_ln_b": jnp.zeros((H,), jnp.float32),
        "wq": _dense_init(ks[3], H, H), "bq": jnp.zeros((H,), jnp.float32),
        "wk": _dense_init(ks[4], H, H), "bk": jnp.zeros((H,), jnp.float32),
        "wv": _dense_init(ks[5], H, H), "bv": jnp.zeros((H,), jnp.float32),
        "wo": _dense_init(ks[6], H, H), "bo": jnp.zeros((H,), jnp.float32),
        "attn_ln_g": jnp.ones((H,), jnp.float32),
        "attn_ln_b": jnp.zeros((H,), jnp.float32),
        "w1": _dense_init(ks[7], H, F), "b1": jnp.zeros((F,), jnp.float32),
        "w2": _dense_init(ks[8], F, H), "b2": jnp.zeros((H,), jnp.float32),
        "ffn_ln_g": jnp.ones((H,), jnp.float32),
        "ffn_ln_b": jnp.zeros((H,), jnp.float32),
        "wp": _dense_init(ks[9], H, H), "bp": jnp.zeros((H,), jnp.float32),
    }


def _layer_norm(x, g, b, eps=1e-12):
    mu = x.mean(-1, keepdims=True)
    var = ((x - mu) ** 2).mean(-1, keepdims=True)
    return (x - mu) / jnp.sqrt(var + eps) * g + b


def bert_forward(p, input_ids, attention_mask, token_type_ids):
    B, S = input_ids.shape
    H, nh = HIDDEN, N_HEADS
    hd = H // nh

    x = (
        p["word_emb"][input_ids]
        + p["pos_emb"][jnp.arange(S)][None]
        + p["type_emb"][token_type_ids]
    )
    x = _layer_norm(x, p["emb_ln_g"], p["emb_ln_b"])

    def split_heads(t):
        return t.reshape(B, S, nh, hd).transpose(0, 2, 1, 3)

    q = split_heads(x @ p["wq"] + p["bq"])
    k = split_heads(x @ p["wk"] + p["bk"])
    v = split_heads(x @ p["wv"] + p["bv"])
    scores = jnp.einsum("bhqd,bhkd->bhqk", q, k) / jnp.sqrt(float(hd))
    scores = scores + (1.0 - attention_mask[:, None, None, :]) * -1e9
    attn = jax.nn.softmax(scores, axis=-1)
    ctx = jnp.einsum("bhqk,bhkd->bhqd", attn, v).transpose(0, 2, 1, 3)
    ctx = ctx.reshape(B, S, H)
    x = _layer_norm(x + ctx @ p["wo"] + p["bo"], p["attn_ln_g"], p["attn_ln_b"])
    ffn = jax.nn.gelu(x @ p["w1"] + p["b1"]) @ p["w2"] + p["b2"]
    encoded = _layer_norm(x + ffn, p["ffn_ln_g"], p["ffn_ln_b"])
    cls = jnp.tanh(encoded[:, 0] @ p["wp"] + p["bp"])
    return encoded, cls


def init_head_params(key):
    ks = jax.random.split(key, 3)
    H, L = HIDDEN, NUM_LABELS
    return {
        "w_cls": _dense_init(ks[0], H, H),
        "b_cls": jnp.zeros((H,), jnp.float32),
        "w_head": _dense_init(ks[1], H, H),
        "b_head": jnp.zeros((H,), jnp.float32),
        "w_out": _dense_init(ks[2], 2 * H, L),
        "b_out": jnp.zeros((L,), jnp.float32),
    }


# ================================== main ===================================
if __name__ == "__main__":
    key = jax.random.PRNGKey(0)
    k_bert, k_head, k_ids = jax.random.split(key, 3)

    bert_params = init_bert_params(k_bert)
    head_params = init_head_params(k_head)
    fused_head = fuse_head_params(head_params)

    input_ids = jax.random.randint(k_ids, (BATCH, SEQ), 0, VOCAB, jnp.int32)
    attention_mask = jnp.ones((BATCH, SEQ), jnp.float32)
    token_type_ids = jnp.zeros((BATCH, SEQ), jnp.int32)
    # batch_head_pos: 1-indexed [start, end) span per batch element (non-empty)
    head_start = jnp.array([3, 5], jnp.int32)
    head_end = jnp.array([7, 9], jnp.int32)

    encoded, cls = bert_forward(bert_params, input_ids, attention_mask, token_type_ids)

    out = single_model_head(encoded, cls, head_start, head_end, fused_head)
    out = jax.block_until_ready(out)

    ref = single_model_head_reference(encoded, cls, head_start, head_end, head_params)
    assert out.shape == (BATCH, NUM_LABELS), out.shape
    assert jnp.allclose(out, ref, atol=1e-4, rtol=1e-4), (out, ref)

    print("KERNEL_OK")
</pallas_src>

<mosaic_0001>
module attributes {stable_mosaic.version = 11 : i64} {
  func.func @_single_model_head_kernel(%arg0: memref<2x2xi32, #tpu.memory_space<vmem>>, %arg1: memref<2x16x128xf32, #tpu.memory_space<vmem>>, %arg2: memref<2x128xf32, #tpu.memory_space<vmem>>, %arg3: memref<256x128xf32, #tpu.memory_space<vmem>>, %arg4: memref<1x128xf32, #tpu.memory_space<vmem>>, %arg5: memref<2x128xf32, #tpu.memory_space<vmem>>) attributes {dimension_semantics = [], scalar_prefetch = 0 : i64, scratch_operands = 0 : i64, tpu.core_type = #tpu.core_type<tc>} {
    %0 = tpu.iota {dimensions = array<i32: 1>} : vector<2x16xi32>
    %c0 = arith.constant 0 : index
    %c0_0 = arith.constant 0 : index
    %1 = vector.load %arg0[%c0, %c0_0] : memref<2x2xi32, #tpu.memory_space<vmem>>, vector<2x1xi32>
    %c1_i32 = arith.constant 1 : i32
    %2 = vector.broadcast %c1_i32 : i32 to vector<2x1xi32>
    %3 = arith.subi %1, %2 : vector<2x1xi32>
    %c0_1 = arith.constant 0 : index
    %c1 = arith.constant 1 : index
    %4 = vector.load %arg0[%c0_1, %c1] : memref<2x2xi32, #tpu.memory_space<vmem>>, vector<2x1xi32>
    %c1_i32_2 = arith.constant 1 : i32
    %5 = vector.broadcast %c1_i32_2 : i32 to vector<2x1xi32>
    %6 = arith.subi %4, %5 : vector<2x1xi32>
    %7 = vector.broadcast %3 : vector<2x1xi32> to vector<2x16xi32>
    %8 = arith.cmpi sge, %0, %7 : vector<2x16xi32>
    %9 = vector.broadcast %6 : vector<2x1xi32> to vector<2x16xi32>
    %10 = arith.cmpi slt, %0, %9 : vector<2x16xi32>
    %11 = arith.andi %8, %10 : vector<2x16xi1>
    %cst = arith.constant 1.000000e+00 : f32
    %cst_3 = arith.constant 0.000000e+00 : f32
    %12 = vector.broadcast %cst : f32 to vector<2x16xf32>
    %13 = vector.broadcast %cst_3 : f32 to vector<2x16xf32>
    %14 = arith.select %11, %12, %13 : vector<2x16xi1>, vector<2x16xf32>
    %c0_4 = arith.constant 0 : index
    %c0_5 = arith.constant 0 : index
    %c0_6 = arith.constant 0 : index
    %15 = vector.load %arg1[%c0_4, %c0_5, %c0_6] : memref<2x16x128xf32, #tpu.memory_space<vmem>>, vector<2x16x128xf32>
    %16 = vector.shape_cast %14 : vector<2x16xf32> to vector<2x16x1xf32>
    %17 = vector.broadcast %16 : vector<2x16x1xf32> to vector<2x16x128xf32>
    %18 = arith.mulf %15, %17 : vector<2x16x128xf32>
    %cst_7 = arith.constant dense<0.000000e+00> : vector<2x128xf32>
    %19 = vector.multi_reduction <add>, %18, %cst_7 [1] : vector<2x16x128xf32> to vector<2x128xf32>
    %c0_i32 = arith.constant 0 : i32
    %c16_i32 = arith.constant 16 : i32
    %20 = vector.broadcast %c0_i32 : i32 to vector<2x1xi32>
    %21 = arith.maxsi %20, %6 : vector<2x1xi32>
    %22 = vector.broadcast %c16_i32 : i32 to vector<2x1xi32>
    %23 = arith.minsi %22, %21 : vector<2x1xi32>
    %c0_i32_8 = arith.constant 0 : i32
    %c16_i32_9 = arith.constant 16 : i32
    %24 = vector.broadcast %c0_i32_8 : i32 to vector<2x1xi32>
    %25 = arith.maxsi %24, %3 : vector<2x1xi32>
    %26 = vector.broadcast %c16_i32_9 : i32 to vector<2x1xi32>
    %27 = arith.minsi %26, %25 : vector<2x1xi32>
    %28 = arith.subi %23, %27 : vector<2x1xi32>
    %c0_i32_10 = arith.constant 0 : i32
    %29 = vector.broadcast %c0_i32_10 : i32 to vector<2x1xi32>
    %30 = arith.maxsi %28, %29 : vector<2x1xi32>
    %31 = arith.sitofp %30 : vector<2x1xi32> to vector<2x1xf32>
    %32 = vector.broadcast %31 : vector<2x1xf32> to vector<2x128xf32>
    %33 = arith.divf %19, %32 : vector<2x128xf32>
    %c0_11 = arith.constant 0 : index
    %c0_12 = arith.constant 0 : index
    %34 = vector.load %arg2[%c0_11, %c0_12] : memref<2x128xf32, #tpu.memory_space<vmem>>, vector<2x128xf32>
    %35 = tpu.concatenate %34, %33 in 1 : vector<2x128xf32>, vector<2x128xf32> -> vector<2x256xf32>
    %c0_13 = arith.constant 0 : index
    %c0_14 = arith.constant 0 : index
    %36 = vector.load %arg3[%c0_13, %c0_14] : memref<256x128xf32, #tpu.memory_space<vmem>>, vector<256x128xf32>
    %cst_15 = arith.constant dense<0.000000e+00> : vector<2x128xf32>
    %37 = tpu.matmul %35, %36, %cst_15 {dimension_numbers = #tpu.dot_dimension_numbers<[1], [0], [0], [1], [0, 0, 1, 1], [], []>} : vector<2x256xf32>, vector<256x128xf32>, vector<2x128xf32> -> vector<2x128xf32>
    %c0_16 = arith.constant 0 : index
    %c0_17 = arith.constant 0 : index
    %38 = vector.load %arg4[%c0_16, %c0_17] : memref<1x128xf32, #tpu.memory_space<vmem>>, vector<1x128xf32>
    %39 = vector.broadcast %38 : vector<1x128xf32> to vector<2x128xf32>
    %40 = arith.addf %37, %39 : vector<2x128xf32>
    %c0_18 = arith.constant 0 : index
    %c0_19 = arith.constant 0 : index
    %41 = vector.load %arg5[%c0_18, %c0_19] : memref<2x128xf32, #tpu.memory_space<vmem>>, vector<2x128xf32>
    tpu.vector_store %arg5[%c0_18, %c0_19], %40 {strides = array<i32>} : memref<2x128xf32, #tpu.memory_space<vmem>>, vector<2x128xf32>,
    return
  }
}

</mosaic_0001>

<llo_original>
// kernel: tpu_custom_call.1
$region0: #{tpu_custom_call.1}
  #allocation0 [shape = 'u32[]', space=smem, size = 0x4, offset = 0x4, fixed_abs, tag = 'smem constant byte address 0x4 - core index']
  #allocation1 [shape = 'u32[72,128]{1,0:T(1,128)}', space=vmem, size = 0x9000, scoped, tag = 'internal scratch']
  %s0 = inlined_call_operand.hbm [shape: s32[2,2], index: 0, kind: input, shape index: {}]
  %s1 = inlined_call_operand.hbm [shape: f32[2,16,128], index: 1, kind: input, shape index: {}]
  %s2 = inlined_call_operand.hbm [shape: f32[2,128], index: 2, kind: input, shape index: {}]
  %s3 = inlined_call_operand.hbm [shape: f32[256,128], index: 3, kind: input, shape index: {}]
  %s4 = inlined_call_operand.vmem [shape: f32[1,128], index: 4, kind: input, shape index: {}]
  %s5 = inlined_call_operand.hbm [shape: f32[2,128], index: 5, kind: output, shape index: {}]
  %s6 = sld [smem:[#allocation0]]
  $region46: #{tpu_custom_call.1} parent=0
    _
  %s8 = ssub.s32 1, %s6
  %s9 = scalar_select 0, %s8, %s6
  $region1: #{tpu_custom_call.1} parent=0
    #allocation2 [shape = 'u8[1024]{0}', space=vmem, size = 0x400, scoped, tag = 'input window, operand 0, single buffered']
    #allocation3 [shape = 's32[1]{0}', space=sflag, size = 0x4, scoped, tag = 'scoped memory for tpu_custom_call.1']
    #allocation4 [shape = 's32[1]{0}', space=sflag, size = 0x4, scoped, tag = 'scoped memory for tpu_custom_call.1']
    #allocation5 [shape = 'u8[16384]{0}', space=vmem, size = 0x4000, scoped, tag = 'input window, operand 1, single buffered']
    #allocation6 [shape = 's32[1]{0}', space=sflag, size = 0x4, scoped, tag = 'scoped memory for tpu_custom_call.1']
    #allocation7 [shape = 'u8[1024]{0}', space=vmem, size = 0x400, scoped, tag = 'input window, operand 2, single buffered']
    #allocation8 [shape = 'u8[131072]{0}', space=vmem, size = 0x20000, scoped, tag = 'input window, operand 3, single buffered']
    #allocation9 [shape = 's32[1]{0}', space=sflag, size = 0x4, scoped, tag = 'scoped memory for tpu_custom_call.1']
    #allocation10 [shape = 'u8[1024]{0}', space=vmem, size = 0x400, scoped, tag = 'output window, operand 0, single buffered']
    %10 = vsyncpa [#allocation3], 0
    %11 = vsyncpa [#allocation6], 0
    %12 = vsyncpa [#allocation9], 0
    %13 = vsyncpa [#allocation4], 0
    // Predicated region
    $region2: #{tpu_custom_call.1} parent=1 // pred_check
      _
    $region3: #{tpu_custom_call.1} parent=1 // pred_check_branch
      %15 = sbr.rel (0) target = $region5
    $region4: #{tpu_custom_call.1} parent=1 // pred_region
      %17 = vsyncadd [#allocation3], 0
      %s19 = sshll.u32 %s0, 4
      %s20 = int_to_ptr.hbm [resolvable:$true] %s19
      %s21 = sshll.u32 [#allocation2], 4
      %s22 = int_to_ptr.vmem [resolvable:$true] %s21
      %24 = dma.hbm_to_vmem [thread:$0]  %s20, 32, %s22, [#allocation3]
    $region5: #{tpu_custom_call.1} parent=1 // pred_fallthru
      _
    // Predicated region
    $region6: #{tpu_custom_call.1} parent=1 // pred_check
      _
    $region7: #{tpu_custom_call.1} parent=1 // pred_check_branch
      %26 = sbr.rel (0) target = $region9
    $region8: #{tpu_custom_call.1} parent=1 // pred_region
      %28 = vsyncadd [#allocation6], 0
      %s29 = sshll.u32 %s1, 4
      %s30 = int_to_ptr.hbm [resolvable:$true] %s29
      %s31 = sshll.u32 [#allocation5], 4
      %s32 = int_to_ptr.vmem [resolvable:$true] %s31
      %37 = dma.hbm_to_vmem [thread:$0]  %s30, 512, %s32, [#allocation6], 128, 128, 8
    $region9: #{tpu_custom_call.1} parent=1 // pred_fallthru
      _
    // Predicated region
    $region10: #{tpu_custom_call.1} parent=1 // pred_check
      _
    $region11: #{tpu_custom_call.1} parent=1 // pred_check_branch
      %39 = sbr.rel (0) target = $region13
    $region12: #{tpu_custom_call.1} parent=1 // pred_region
      %41 = vsyncadd [#allocation6], 0
      %s43 = sshll.u32 %s2, 4
      %s44 = int_to_ptr.hbm [resolvable:$true] %s43
      %s45 = sshll.u32 [#allocation7], 4
      %s46 = int_to_ptr.vmem [resolvable:$true] %s45
      %48 = dma.hbm_to_vmem [thread:$0]  %s44, 32, %s46, [#allocation6]
    $region13: #{tpu_custom_call.1} parent=1 // pred_fallthru
      _
    // Predicated region
    $region14: #{tpu_custom_call.1} parent=1 // pred_check
      _
    $region15: #{tpu_custom_call.1} parent=1 // pred_check_branch
      %50 = sbr.rel (0) target = $region17
    $region16: #{tpu_custom_call.1} parent=1 // pred_region
      %52 = vsyncadd [#allocation9], 0
      %s53 = sshll.u32 %s3, 4
      %s54 = int_to_ptr.hbm [resolvable:$true] %s53
      %s55 = sshll.u32 [#allocation8], 4
      %s56 = int_to_ptr.vmem [resolvable:$true] %s55
      %61 = dma.hbm_to_vmem [thread:$0]  %s54, 4096, %s56, [#allocation9], 128, 128, 8
    $region17: #{tpu_custom_call.1} parent=1 // pred_fallthru
      _
    // Predicated region
    $region18: #{tpu_custom_call.1} parent=1 // pred_check
      _
    $region19: #{tpu_custom_call.1} parent=1 // pred_check_branch
      %63 = sbr.rel (0) target = $region21
    $region20: #{tpu_custom_call.1} parent=1 // pred_region
      _
    $region21: #{tpu_custom_call.1} parent=1 // pred_fallthru
      _
    // Predicated region
    $region22: #{tpu_custom_call.1} parent=1 // pred_check
      _
    $region23: #{tpu_custom_call.1} parent=1 // pred_check_branch
      %65 = sbr.rel (0) target = $region25
    $region24: #{tpu_custom_call.1} parent=1 // pred_region
      %67 = dma.done [#allocation3], 32
    $region25: #{tpu_custom_call.1} parent=1 // pred_fallthru
      _
    // Predicated region
    $region26: #{tpu_custom_call.1} parent=1 // pred_check
      _
    $region27: #{tpu_custom_call.1} parent=1 // pred_check_branch
      %69 = sbr.rel (0) target = $region29
    $region28: #{tpu_custom_call.1} parent=1 // pred_region
      %71 = dma.done [#allocation6], 512
    $region29: #{tpu_custom_call.1} parent=1 // pred_fallthru
      _
    // Predicated region
    $region30: #{tpu_custom_call.1} parent=1 // pred_check
      _
    $region31: #{tpu_custom_call.1} parent=1 // pred_check_branch
      %73 = sbr.rel (0) target = $region33
    $region32: #{tpu_custom_call.1} parent=1 // pred_region
      %75 = dma.done [#allocation6], 32
    $region33: #{tpu_custom_call.1} parent=1 // pred_fallthru
      _
    // Predicated region
    $region34: #{tpu_custom_call.1} parent=1 // pred_check
      _
    $region35: #{tpu_custom_call.1} parent=1 // pred_check_branch
      %77 = sbr.rel (0) target = $region37
    $region36: #{tpu_custom_call.1} parent=1 // pred_region
      %79 = dma.done [#allocation9], 4096
    $region37: #{tpu_custom_call.1} parent=1 // pred_fallthru
      _
    %v80 = vlaneseq
    %v81 = vand.u32 %v80, 127
    %v82 = vld [vmem:[#allocation2] sm:$0x3]
    %v83 = vsub.s32 %v82, 1
    %84 = vset.pattern.permute.xlu0 0
    %85 = vperm.xlu0 %84, %v83
    %v86 = vpop.permute.xlu0 %85
    %vm87 = vcmp.ge.s32.totalorder %v81, %v86
    %88 = vset.pattern.permute.xlu0 1
    %89 = vperm.xlu0 %88, %v83
    %v90 = vpop.permute.xlu0 %89
    %vm91 = vcmp.lt.s32.totalorder %v81, %v90
    %vm92 = vmand %vm87, %vm91
    %v93 = vsel %vm92, 1.0, 0.0
    %v94 = vld [vmem:[#allocation5] sm:$0xff]
    %v95 = vld [vmem:[#allocation5 + $0x8] sm:$0xff]
    %v96 = vld [vmem:[#allocation5 + $0x10] sm:$0xff]
    %v97 = vld [vmem:[#allocation5 + $0x18] sm:$0xff]
    %v98 = vperm.slane %v93, 0
    %v99 = vlaneseq
    %v100 = vshrl.u32 %v99, 7
    %102 = vset.pattern.permute.xlu0 %v100
    %103 = vperm.xlu0 %102, %v98
    %v104 = vpop.permute.xlu0 %103
    %v105 = vlaneseq
    %v106 = vshrl.u32 %v105, 7
    %v107 = vadd.s32 %v106, 8
    %108 = vset.pattern.permute.xlu0 %v107
    %109 = vperm.xlu0 %108, %v98
    %v110 = vpop.permute.xlu0 %109
    %v111 = vperm.slane %v93, 1
    %v112 = vlaneseq
    %v113 = vshrl.u32 %v112, 7
    %115 = vset.pattern.permute.xlu0 %v113
    %116 = vperm.xlu0 %115, %v111
    %v117 = vpop.permute.xlu0 %116
    %v118 = vlaneseq
    %v119 = vshrl.u32 %v118, 7
    %v120 = vadd.s32 %v119, 8
    %121 = vset.pattern.permute.xlu0 %v120
    %122 = vperm.xlu0 %121, %v111
    %v123 = vpop.permute.xlu0 %122
    %v124 = vmul.f32 %v94, %v104
    %v125 = vmul.f32 %v95, %v110
    %v126 = vmul.f32 %v96, %v117
    %v127 = vmul.f32 %v97, %v123
    %v128 = vadd.f32 %v124, %v125
    %v129 = vrot.slane %v128, 4
    %v130 = vadd.f32 %v128, %v129
    %v131 = vrot.slane %v130, 2
    %v132 = vadd.f32 %v130, %v131
    %v133 = vrot.slane %v132, 1
    %v134 = vadd.f32 %v132, %v133
    %v135 = vadd.f32 %v126, %v127
    %v136 = vrot.slane %v135, 4
    %v137 = vadd.f32 %v135, %v136
    %v138 = vrot.slane %v137, 2
    %v139 = vadd.f32 %v137, %v138
    %v140 = vrot.slane %v139, 1
    %v141 = vadd.f32 %v139, %v140
    %vm142 = vcmp.gt.s32.totalorder %v83, 0
    %v143 = vsel %vm142, %v83, 0
    %vm144 = vcmp.lt.s32.totalorder %v143, 16
    %v145 = vsel %vm144, %v143, 16
    %146 = vrot.lane.b32.xlu0 %v145, 1
    %v147 = vpop.permute.xlu0 %146
    %v148 = vsub.s32 %v145, %v147
    %vm149 = vcmp.gt.s32.totalorder %v148, 0
    %v150 = vsel %vm149, %v148, 0
    %v151 = vcvt.s32.f32 %v150
    %153 = vset.pattern.permute.xlu0 1
    %154 = vperm.xlu0 %153, %v151
    %v155 = vpop.permute.xlu0 %154
    %v156 = vrot.slane %v155, 1
    %v159 = vrcp.pop %v155
    %v160 = vmul.f32 %v155, %v159
    %v161 = vsub.f32 1.0, %v160
    %v162 = vmul.f32 %v159, %v161
    %v163 = vadd.f32 %v159, %v162
    %vm164 = vweird.f32 %v155
    %vm165 = vweird.f32 %v159
    %vm166 = vmor %vm164, %vm165
    %v167 = vsel %vm166, %v159, %v163
    %v168 = vand.u32 2147483647, %v155
    %vm169 = vcmp.eq.f32.partialorder %v168, 8.507059e+37
    %v170 = vand.u32 %v155, 2147483648
    %v171 = vor.u32 1.1754944e-38, %v170
    %v172 = vsel %vm169, %v171, %v167
    %v173 = vmul.f32 %v134, %v172
    %v174 = vrcp.pop %v156
    %v175 = vmul.f32 %v156, %v174
    %v176 = vsub.f32 1.0, %v175
    %v177 = vmul.f32 %v174, %v176
    %v178 = vadd.f32 %v174, %v177
    %vm179 = vweird.f32 %v156
    %vm180 = vweird.f32 %v174
    %vm181 = vmor %vm179, %vm180
    %v182 = vsel %vm181, %v174, %v178
    %v183 = vand.u32 2147483647, %v156
    %vm184 = vcmp.eq.f32.partialorder %v183, 8.507059e+37
    %v185 = vand.u32 %v156, 2147483648
    %v186 = vor.u32 1.1754944e-38, %v185
    %v187 = vsel %vm184, %v186, %v182
    %v188 = vmul.f32 %v141, %v187
    %v189 = vld [vmem:[#allocation7] sm:$0x3]
    %v192 = vrot.slane %v188, 7
    %vm193 = vcmask 1041409
    %v194 = vsel %vm193, %v192, %v173
    %v196 = vld [vmem:[#allocation8] sm:$0xff]
    %v197 = vld [vmem:[#allocation8 + $0x8] sm:$0xff]
    %v198 = vld [vmem:[#allocation8 + $0x10] sm:$0xff]
    %v199 = vld [vmem:[#allocation8 + $0x18] sm:$0xff]
    %v200 = vld [vmem:[#allocation8 + $0x20] sm:$0xff]
    %v201 = vld [vmem:[#allocation8 + $0x28] sm:$0xff]
    %v202 = vld [vmem:[#allocation8 + $0x30] sm:$0xff]
    %v203 = vld [vmem:[#allocation8 + $0x38] sm:$0xff]
    %v204 = vld [vmem:[#allocation8 + $0x40] sm:$0xff]
    %v205 = vld [vmem:[#allocation8 + $0x48] sm:$0xff]
    %v206 = vld [vmem:[#allocation8 + $0x50] sm:$0xff]
    %v207 = vld [vmem:[#allocation8 + $0x58] sm:$0xff]
    %v208 = vld [vmem:[#allocation8 + $0x60] sm:$0xff]
    %v209 = vld [vmem:[#allocation8 + $0x68] sm:$0xff]
    %v210 = vld [vmem:[#allocation8 + $0x70] sm:$0xff]
    %v211 = vld [vmem:[#allocation8 + $0x78] sm:$0xff]
    %v212 = vld [vmem:[#allocation8 + $0x80] sm:$0xff]
    %v213 = vld [vmem:[#allocation8 + $0x88] sm:$0xff]
    %v214 = vld [vmem:[#allocation8 + $0x90] sm:$0xff]
    %v215 = vld [vmem:[#allocation8 + $0x98] sm:$0xff]
    %v216 = vld [vmem:[#allocation8 + $0xa0] sm:$0xff]
    %v217 = vld [vmem:[#allocation8 + $0xa8] sm:$0xff]
    %v218 = vld [vmem:[#allocation8 + $0xb0] sm:$0xff]
    %v219 = vld [vmem:[#allocation8 + $0xb8] sm:$0xff]
    %v220 = vld [vmem:[#allocation8 + $0xc0] sm:$0xff]
    %v221 = vld [vmem:[#allocation8 + $0xc8] sm:$0xff]
    %v222 = vld [vmem:[#allocation8 + $0xd0] sm:$0xff]
    %v223 = vld [vmem:[#allocation8 + $0xd8] sm:$0xff]
    %v224 = vld [vmem:[#allocation8 + $0xe0] sm:$0xff]
    %v225 = vld [vmem:[#allocation8 + $0xe8] sm:$0xff]
    %v226 = vld [vmem:[#allocation8 + $0xf0] sm:$0xff]
    %v227 = vld [vmem:[#allocation8 + $0xf8] sm:$0xff]
    %v228 = vld [vmem:[%s4] sm:$0x1]
    %v230 = vperm.slane %v228, 0
    %232 = vmatpush.msra.mxu0 %v211
    %233 = vmatpush.msra.mxu0 %v210
    %234 = vmatpush.msra.mxu0 %v209
    %235 = vmatpush.msra.mxu0 %v208
    %236 = vmatpush.msra.mxu0 %v207
    %237 = vmatpush.msra.mxu0 %v206
    %238 = vmatpush.msra.mxu0 %v205
    %239 = vmatpush.msra.mxu0 %v204
    %240 = vmatpush.msra.mxu0 %v203
    %241 = vmatpush.msra.mxu0 %v202
    %242 = vmatpush.msra.mxu0 %v201
    %243 = vmatpush.msra.mxu0 %v200
    %244 = vmatpush.msra.mxu0 %v199
    %245 = vmatpush.msra.mxu0 %v198
    %246 = vmatpush.msra.mxu0 %v197
    %247 = vmatpush.msra.mxu0 %v196
    %248 = vmatmul.f32.gmra.mxu0 %v189
    %v249 = vpop.f32.mrf.mxu0
    %v250 = vadd.f32 %v230, %v249
    %251 = vdwg.mxu0
    %252 = vmatpush.msra.mxu0 %v227
    %253 = vmatpush.msra.mxu0 %v226
    %254 = vmatpush.msra.mxu0 %v225
    %255 = vmatpush.msra.mxu0 %v224
    %256 = vmatpush.msra.mxu0 %v223
    %257 = vmatpush.msra.mxu0 %v222
    %258 = vmatpush.msra.mxu0 %v221
    %259 = vmatpush.msra.mxu0 %v220
    %260 = vmatpush.msra.mxu0 %v219
    %261 = vmatpush.msra.mxu0 %v218
    %262 = vmatpush.msra.mxu0 %v217
    %263 = vmatpush.msra.mxu0 %v216
    %264 = vmatpush.msra.mxu0 %v215
    %265 = vmatpush.msra.mxu0 %v214
    %266 = vmatpush.msra.mxu0 %v213
    %267 = vmatpush.msra.mxu0 %v212
    %268 = vmatmul.f32.gmra.mxu0 %v194
    %v269 = vpop.f32.mrf.mxu0
    %v270 = vadd.f32 %v250, %v269
    %271 = vdwg.mxu0
    %272 = vst [vmem:[#allocation10] sm:$0x3] %v270
    // Predicated region
    $region38: #{tpu_custom_call.1} parent=1 // pred_check
      _
    $region39: #{tpu_custom_call.1} parent=1 // pred_check_branch
      %274 = sbr.rel (0) target = $region41
    $region40: #{tpu_custom_call.1} parent=1 // pred_region
      %276 = vsyncadd [#allocation4], 0
      %s278 = sshll.u32 [#allocation10], 4
      %s279 = int_to_ptr.vmem [resolvable:$true] %s278
      %s280 = sshll.u32 %s5, 4
      %s281 = int_to_ptr.hbm [resolvable:$true] %s280
      %283 = dma.vmem_to_hbm [thread:$0]  %s279, 32, %s281, [#allocation4]
    $region41: #{tpu_custom_call.1} parent=1 // pred_fallthru
      _
    // Predicated region
    $region42: #{tpu_custom_call.1} parent=1 // pred_check
      _
    $region43: #{tpu_custom_call.1} parent=1 // pred_check_branch
      %285 = sbr.rel (0) target = $region45
    $region44: #{tpu_custom_call.1} parent=1 // pred_region
      %287 = dma.done [#allocation4], 32
    $region45: #{tpu_custom_call.1} parent=1 // pred_fallthru
      _
    %288 = vsyncpa [#allocation3], 1
    %289 = vsyncpa [#allocation6], 1
    %290 = vsyncpa [#allocation9], 1
    %291 = vsyncpa [#allocation4], 1

</llo_original>
